<compile_context>
chip_gen: v6e
topology: v6e:2x2x1
jax: 0.10.0
libtpu: 0.0.40
codegen_flags: <defaults>
</compile_context>

<pallas_src>
import jax
import jax.numpy as jnp
from jax.experimental import pallas as pl
from jax.experimental.pallas import tpu as pltpu

LANES = 128          # batch maps onto the lane axis
SUBLANES = 8         # f32 sublane granularity
MAX_TILE_ROWS = 512  # sublanes per grid step (>=512 reaches ~85% of HBM roofline)


def _linear(x, params_ref):
    """x: (tile_rows, 128) f32; params: [w0, w1, b0, b1] in SMEM."""
    w0 = params_ref[0]
    w1 = params_ref[1]
    b0 = params_ref[2]
    b1 = params_ref[3]
    l0 = x * w0 + b0   # class-0 logit, VPU FMA
    l1 = x * w1 + b1   # class-1 logit, VPU FMA
    return l0, l1


def _kernel_both(x_ref, params_ref, l0_ref, l1_ref, pred_ref):
    l0, l1 = _linear(x_ref[...], params_ref)
    l0_ref[...] = l0
    l1_ref[...] = l1
    # argmax(softmax(logits)) == argmax(logits); ties -> class 0 (first index).
    pred_ref[...] = (l1 > l0).astype(jnp.int32)


def _kernel_logits(x_ref, params_ref, l0_ref, l1_ref):
    l0, l1 = _linear(x_ref[...], params_ref)
    l0_ref[...] = l0
    l1_ref[...] = l1


def _kernel_preds(x_ref, params_ref, pred_ref):
    l0, l1 = _linear(x_ref[...], params_ref)
    pred_ref[...] = (l1 > l0).astype(jnp.int32)


def _round_up(v, m):
    return ((v + m - 1) // m) * m


def _run(x, weight, bias, *, want_logits, want_preds):
    assert want_logits or want_preds
    B, in_features = x.shape
    num_classes = weight.shape[0]
    assert in_features == 1 and num_classes == 2, "SimpleModel is Linear(1, 2)"

    # Kernel math and stored logits are f32 everywhere (v5e has no bf16 VPU).
    x = x.astype(jnp.float32)

    # Batch-on-lanes layout: pad B up to rows*128 with rows a multiple of 8,
    # tiled over the grid in blocks of tile_rows sublanes.
    rows = _round_up(max((B + LANES - 1) // LANES, 1), SUBLANES)
    tile_rows = min(rows, MAX_TILE_ROWS)
    rows = _round_up(rows, tile_rows)
    grid = (rows // tile_rows,)

    x_lanes = (
        jnp.zeros((rows * LANES,), jnp.float32)
        .at[:B].set(x[:, 0])
        .reshape(rows, LANES)
    )

    # [w0, w1, b0, b1] as 4 scalars in SMEM (no VMEM double-buffer for 16 B).
    params = jnp.concatenate(
        [weight.reshape(-1), bias.reshape(-1)]
    ).astype(jnp.float32)

    tile_spec = pl.BlockSpec((tile_rows, LANES), lambda i: (i, 0))

    out_shapes = []
    out_specs = []
    if want_logits:
        out_shapes += [jax.ShapeDtypeStruct((rows, LANES), jnp.float32)] * 2
        out_specs += [tile_spec, tile_spec]
    if want_preds:
        out_shapes += [jax.ShapeDtypeStruct((rows, LANES), jnp.int32)]
        out_specs += [tile_spec]

    if want_logits and want_preds:
        kernel = _kernel_both
    elif want_logits:
        kernel = _kernel_logits
    else:
        kernel = _kernel_preds

    n_elems = rows * LANES
    bytes_accessed = 4 * n_elems + 16 + 4 * n_elems * len(out_shapes)
    cost = pl.CostEstimate(
        flops=4 * n_elems, transcendentals=0, bytes_accessed=bytes_accessed
    )

    outs = pl.pallas_call(
        kernel,
        out_shape=tuple(out_shapes),
        grid=grid,
        in_specs=[
            tile_spec,
            pl.BlockSpec(memory_space=pltpu.MemorySpace.SMEM),
        ],
        out_specs=tuple(out_specs),
        compiler_params=pltpu.CompilerParams(
            dimension_semantics=("parallel",),  # batch tiles shard across v7x cores
        ),
        cost_estimate=cost,
    )(x_lanes, params)

    outs = list(outs)
    logits = None
    preds = None
    if want_logits:
        l0, l1 = outs[0], outs[1]
        logits = jnp.stack([l0.reshape(-1), l1.reshape(-1)], axis=-1)[:B]
        outs = outs[2:]
    if want_preds:
        preds = outs[0].reshape(-1)[:B]
    return logits, preds


def simple_model_forward_and_predict(x, weight, bias):
    """x: (B, 1), weight: (2, 1), bias: (2,) -> (logits (B, 2), preds (B,))."""
    return _run(x, weight, bias, want_logits=True, want_preds=True)


def simple_model_forward(x, weight, bias):
    """SimpleModel.forward: x @ W^T + b (logits only, no preds writeback)."""
    return _run(x, weight, bias, want_logits=True, want_preds=False)[0]


def simple_model_predict(x, weight, bias):
    """SimpleModel.predict: argmax(softmax(fc(x)), -1) (preds only)."""
    # TODO(synk): preds are int32; torch.argmax returns int64 if bit-exact
    # dtype parity matters.
    return _run(x, weight, bias, want_logits=False, want_preds=True)[1]


if __name__ == "__main__":
    input_dim = 1
    num_classes = 2
    batch = 8

    kw, kb, kx = jax.random.split(jax.random.PRNGKey(0), 3)
    # PyTorch nn.Linear default init: U(-1/sqrt(in), 1/sqrt(in))
    bound = 1.0 / (input_dim ** 0.5)
    weight = jax.random.uniform(
        kw, (num_classes, input_dim), jnp.float32, -bound, bound)
    bias = jax.random.uniform(
        kb, (num_classes,), jnp.float32, -bound, bound)
    x = jax.random.normal(kx, (batch, input_dim), jnp.float32)

    # Combined kernel.
    logits, preds = simple_model_forward_and_predict(x, weight, bias)
    # Gated single-output kernels.
    logits_only = simple_model_forward(x, weight, bias)
    preds_only = simple_model_predict(x, weight, bias)
    jax.block_until_ready((logits, preds, logits_only, preds_only))

    # Plain-JAX reference.
    ref_logits = x @ weight.T + bias[None, :]
    ref_preds = jnp.argmax(jax.nn.softmax(ref_logits, axis=-1), axis=-1)

    assert logits.shape == (batch, num_classes)
    assert preds.shape == (batch,)
    assert jnp.allclose(logits, ref_logits, atol=1e-6), "logits mismatch"
    assert jnp.allclose(logits_only, ref_logits, atol=1e-6), "forward-only mismatch"
    assert jnp.array_equal(preds, ref_preds), "predictions mismatch"
    assert jnp.array_equal(preds_only, ref_preds), "predict-only mismatch"

    print("KERNEL_OK")
</pallas_src>

<mosaic_0001>
module attributes {stable_mosaic.version = 11 : i64} {
  func.func @_kernel_both(%arg0: i32, %arg1: memref<8x128xf32, #tpu.memory_space<vmem>>, %arg2: memref<4xf32, #tpu.memory_space<smem>>, %arg3: memref<8x128xf32, #tpu.memory_space<vmem>>, %arg4: memref<8x128xf32, #tpu.memory_space<vmem>>, %arg5: memref<8x128xi32, #tpu.memory_space<vmem>>) attributes {dimension_semantics = [#tpu.dimension_semantics<parallel>], iteration_bounds = array<i64: 1>, scalar_prefetch = 0 : i64, scratch_operands = 0 : i64, tpu.core_type = #tpu.core_type<tc>, window_params = [{transform_indices = @transform_0, window_bounds = array<i64: 8, 128>}, {transform_indices = @transform_1, window_bounds = array<i64: 4>}, {transform_indices = @transform_2, window_bounds = array<i64: 8, 128>}, {transform_indices = @transform_3, window_bounds = array<i64: 8, 128>}, {transform_indices = @transform_4, window_bounds = array<i64: 8, 128>}]} {
    %c0 = arith.constant 0 : index
    %c0_0 = arith.constant 0 : index
    %0 = vector.load %arg1[%c0, %c0_0] : memref<8x128xf32, #tpu.memory_space<vmem>>, vector<8x128xf32>
    %c0_1 = arith.constant 0 : index
    %1 = memref.load %arg2[%c0_1] : memref<4xf32, #tpu.memory_space<smem>>
    %c1 = arith.constant 1 : index
    %2 = memref.load %arg2[%c1] : memref<4xf32, #tpu.memory_space<smem>>
    %c2 = arith.constant 2 : index
    %3 = memref.load %arg2[%c2] : memref<4xf32, #tpu.memory_space<smem>>
    %c3 = arith.constant 3 : index
    %4 = memref.load %arg2[%c3] : memref<4xf32, #tpu.memory_space<smem>>
    %5 = vector.broadcast %1 : f32 to vector<8x128xf32>
    %6 = arith.mulf %0, %5 : vector<8x128xf32>
    %7 = vector.broadcast %3 : f32 to vector<8x128xf32>
    %8 = arith.addf %6, %7 : vector<8x128xf32>
    %9 = vector.broadcast %2 : f32 to vector<8x128xf32>
    %10 = arith.mulf %0, %9 : vector<8x128xf32>
    %11 = vector.broadcast %4 : f32 to vector<8x128xf32>
    %12 = arith.addf %10, %11 : vector<8x128xf32>
    %c0_2 = arith.constant 0 : index
    %c0_3 = arith.constant 0 : index
    %13 = vector.load %arg3[%c0_2, %c0_3] : memref<8x128xf32, #tpu.memory_space<vmem>>, vector<8x128xf32>
    tpu.vector_store %arg3[%c0_2, %c0_3], %8 {strides = array<i32>} : memref<8x128xf32, #tpu.memory_space<vmem>>, vector<8x128xf32>,
    %c0_4 = arith.constant 0 : index
    %c0_5 = arith.constant 0 : index
    %14 = vector.load %arg4[%c0_4, %c0_5] : memref<8x128xf32, #tpu.memory_space<vmem>>, vector<8x128xf32>
    tpu.vector_store %arg4[%c0_4, %c0_5], %12 {strides = array<i32>} : memref<8x128xf32, #tpu.memory_space<vmem>>, vector<8x128xf32>,
    %15 = arith.cmpf ogt, %12, %8 : vector<8x128xf32>
    %16 = arith.extui %15 : vector<8x128xi1> to vector<8x128xi32>
    %c0_6 = arith.constant 0 : index
    %c0_7 = arith.constant 0 : index
    %17 = vector.load %arg5[%c0_6, %c0_7] : memref<8x128xi32, #tpu.memory_space<vmem>>, vector<8x128xi32>
    tpu.vector_store %arg5[%c0_6, %c0_7], %16 {strides = array<i32>} : memref<8x128xi32, #tpu.memory_space<vmem>>, vector<8x128xi32>,
    return
  }
  func.func @transform_0(%arg0: i32) -> (i32, i32) {
    %c0_i32 = arith.constant 0 : i32
    %c0_i32_0 = arith.constant 0 : i32
    return %arg0, %c0_i32 : i32, i32
  }
  func.func @transform_1(%arg0: i32) -> i32 {
    %c0_i32 = arith.constant 0 : i32
    %c0_i32_0 = arith.constant 0 : i32
    return %c0_i32 : i32
  }
  func.func @transform_2(%arg0: i32) -> (i32, i32) {
    %c0_i32 = arith.constant 0 : i32
    %c0_i32_0 = arith.constant 0 : i32
    return %arg0, %c0_i32 : i32, i32
  }
  func.func @transform_3(%arg0: i32) -> (i32, i32) {
    %c0_i32 = arith.constant 0 : i32
    %c0_i32_0 = arith.constant 0 : i32
    return %arg0, %c0_i32 : i32, i32
  }
  func.func @transform_4(%arg0: i32) -> (i32, i32) {
    %c0_i32 = arith.constant 0 : i32
    %c0_i32_0 = arith.constant 0 : i32
    return %arg0, %c0_i32 : i32, i32
  }
}

</mosaic_0001>

<llo_original>
// kernel: tpu_custom_call.1
$region0: #{tpu_custom_call.1}
  #allocation0 [shape = 'u32[]', space=smem, size = 0x4, offset = 0x4, fixed_abs, tag = 'smem constant byte address 0x4 - core index']
  #allocation1 [shape = 'u32[144,128]{1,0:T(1,128)}', space=vmem, size = 0x12000, scoped, tag = 'internal scratch']
  %s0 = inlined_call_operand.hbm [shape: f32[8,128], index: 0, kind: input, shape index: {}]
  %s1 = inlined_call_operand.vmem [shape: f32[4], index: 1, kind: input, shape index: {}]
  %s2 = inlined_call_operand.hbm [shape: f32[8,128], index: 2, kind: output, shape index: {0}]
  %s3 = inlined_call_operand.hbm [shape: f32[8,128], index: 3, kind: output, shape index: {1}]
  %s4 = inlined_call_operand.hbm [shape: s32[8,128], index: 4, kind: output, shape index: {2}]
  %5 = xla_tuple %s2, %s3, %s4
  %s6 = sld [smem:[#allocation0]]
  $region42: #{tpu_custom_call.1} parent=0
    _
  %s8 = ssub.s32 1, %s6
  %s9 = scalar_select 0, %s8, %s6
  $region1: #{tpu_custom_call.1} parent=0
    #allocation2 [shape = 'u8[4096]{0}', space=vmem, size = 0x1000, scoped, tag = 'input window, operand 0, single buffered']
    #allocation3 [shape = 's32[1]{0}', space=sflag, size = 0x4, scoped, tag = 'scoped memory for tpu_custom_call.1']
    #allocation4 [shape = 's32[1]{0}', space=sflag, size = 0x4, scoped, tag = 'scoped memory for tpu_custom_call.1']
    #allocation5 [shape = 's32[1]{0}', space=sflag, size = 0x4, scoped, tag = 'scoped memory for tpu_custom_call.1']
    #allocation6 [shape = 'u8[512]{0}', space=smem, size = 0x200, scoped, tag = 'input window, operand 1, single buffered']
    #allocation7 [shape = 'u8[4096]{0}', space=vmem, size = 0x1000, scoped, tag = 'output window, operand 0, single buffered']
    #allocation8 [shape = 'u8[4096]{0}', space=vmem, size = 0x1000, scoped, tag = 'output window, operand 1, single buffered']
    #allocation9 [shape = 's32[1]{0}', space=sflag, size = 0x4, scoped, tag = 'scoped memory for tpu_custom_call.1']
    #allocation10 [shape = 'u8[4096]{0}', space=vmem, size = 0x1000, scoped, tag = 'output window, operand 2, single buffered']
    %10 = vsyncpa [#allocation3], 0
    %11 = vsyncpa [#allocation5], 0
    %12 = vsyncpa [#allocation4], 0
    %13 = vsyncpa [#allocation9], 0
    // Predicated region
    $region2: #{tpu_custom_call.1} parent=1 // pred_check
      _
    $region3: #{tpu_custom_call.1} parent=1 // pred_check_branch
      %15 = sbr.rel (0) target = $region5
    $region4: #{tpu_custom_call.1} parent=1 // pred_region
      %s17 = ssub.s32 128, 128
      %18 = vsyncadd [#allocation3], %s17
      %s20 = sshll.u32 [#allocation2], 4
      %s21 = int_to_ptr.vmem [resolvable:$true] %s20
      %23 = dma.hbm_to_vmem [thread:$0]  %s0, 128, %s21, [#allocation3]
    $region5: #{tpu_custom_call.1} parent=1 // pred_fallthru
      _
    // Predicated region
    $region6: #{tpu_custom_call.1} parent=1 // pred_check
      _
    $region7: #{tpu_custom_call.1} parent=1 // pred_check_branch
      %25 = sbr.rel (0) target = $region9
    $region8: #{tpu_custom_call.1} parent=1 // pred_region
      %s27 = ssub.s32 16, 16
      %28 = vsyncadd [#allocation5], %s27
      %s30 = sshll.u32 %s1, 4
      %s31 = int_to_ptr.vmem [resolvable:$true] %s30
      %33 = dma.vmem_to_smem %s31, 16, [#allocation6], [#allocation5]
    $region9: #{tpu_custom_call.1} parent=1 // pred_fallthru
      _
    // Predicated region
    $region10: #{tpu_custom_call.1} parent=1 // pred_check
      _
    $region11: #{tpu_custom_call.1} parent=1 // pred_check_branch
      %35 = sbr.rel (0) target = $region13
    $region12: #{tpu_custom_call.1} parent=1 // pred_region
      %36 = dma.done [#allocation3], 128
    $region13: #{tpu_custom_call.1} parent=1 // pred_fallthru
      _
    // Predicated region
    $region14: #{tpu_custom_call.1} parent=1 // pred_check
      _
    $region15: #{tpu_custom_call.1} parent=1 // pred_check_branch
      %38 = sbr.rel (0) target = $region17
    $region16: #{tpu_custom_call.1} parent=1 // pred_region
      %39 = dma.done [#allocation5], 16
    $region17: #{tpu_custom_call.1} parent=1 // pred_fallthru
      _
    %40 = sfence
    %v41 = vld [vmem:[#allocation2] sm:$0xff]
    %s42 = sld [smem:[#allocation6]]
    %s43 = sld [smem:[#allocation6 + $0x1]]
    %s44 = sld [smem:[#allocation6 + $0x2]]
    %s45 = sld [smem:[#allocation6 + $0x3]]
    %v46 = vstv %s42
    %v47 = vmul.f32 %v41, %v46
    %v48 = vstv %s44
    %v49 = vadd.f32 %v47, %v48
    %v50 = vstv %s43
    %v51 = vmul.f32 %v41, %v50
    %v52 = vstv %s45
    %v53 = vadd.f32 %v51, %v52
    %54 = vst [vmem:[#allocation7] sm:$0xff] %v49
    %55 = vst [vmem:[#allocation8] sm:$0xff] %v53
    %vm56 = vcmp.gt.f32.partialorder %v53, %v49
    %v57 = vsel %vm56, 1, 0
    %58 = vst [vmem:[#allocation10] sm:$0xff] %v57
    // Predicated region
    $region18: #{tpu_custom_call.1} parent=1 // pred_check
      _
    $region19: #{tpu_custom_call.1} parent=1 // pred_check_branch
      %60 = sbr.rel (0) target = $region21
    $region20: #{tpu_custom_call.1} parent=1 // pred_region
      %s62 = ssub.s32 128, 128
      %63 = vsyncadd [#allocation4], %s62
      %s65 = sshll.u32 [#allocation7], 4
      %s66 = int_to_ptr.vmem [resolvable:$true] %s65
      %68 = dma.vmem_to_hbm [thread:$0]  %s66, 128, %s2, [#allocation4]
    $region21: #{tpu_custom_call.1} parent=1 // pred_fallthru
      _
    // Predicated region
    $region22: #{tpu_custom_call.1} parent=1 // pred_check
      _
    $region23: #{tpu_custom_call.1} parent=1 // pred_check_branch
      %70 = sbr.rel (0) target = $region25
    $region24: #{tpu_custom_call.1} parent=1 // pred_region
      %s72 = ssub.s32 128, 128
      %73 = vsyncadd [#allocation9], %s72
      %s75 = sshll.u32 [#allocation8], 4
      %s76 = int_to_ptr.vmem [resolvable:$true] %s75
      %78 = dma.vmem_to_hbm [thread:$0]  %s76, 128, %s3, [#allocation9]
    $region25: #{tpu_custom_call.1} parent=1 // pred_fallthru
      _
    // Predicated region
    $region26: #{tpu_custom_call.1} parent=1 // pred_check
      _
    $region27: #{tpu_custom_call.1} parent=1 // pred_check_branch
      %80 = sbr.rel (0) target = $region29
    $region28: #{tpu_custom_call.1} parent=1 // pred_region
      %s82 = ssub.s32 128, 128
      %83 = vsyncadd [#allocation9], %s82
      %s85 = sshll.u32 [#allocation10], 4
      %s86 = int_to_ptr.vmem [resolvable:$true] %s85
      %88 = dma.vmem_to_hbm [thread:$0]  %s86, 128, %s4, [#allocation9]
    $region29: #{tpu_custom_call.1} parent=1 // pred_fallthru
      _
    // Predicated region
    $region30: #{tpu_custom_call.1} parent=1 // pred_check
      _
    $region31: #{tpu_custom_call.1} parent=1 // pred_check_branch
      %90 = sbr.rel (0) target = $region33
    $region32: #{tpu_custom_call.1} parent=1 // pred_region
      %91 = dma.done [#allocation4], 128
    $region33: #{tpu_custom_call.1} parent=1 // pred_fallthru
      _
    // Predicated region
    $region34: #{tpu_custom_call.1} parent=1 // pred_check
      _
    $region35: #{tpu_custom_call.1} parent=1 // pred_check_branch
      %93 = sbr.rel (0) target = $region37
    $region36: #{tpu_custom_call.1} parent=1 // pred_region
      %94 = dma.done [#allocation9], 128
    $region37: #{tpu_custom_call.1} parent=1 // pred_fallthru
      _
    // Predicated region
    $region38: #{tpu_custom_call.1} parent=1 // pred_check
      _
    $region39: #{tpu_custom_call.1} parent=1 // pred_check_branch
      %96 = sbr.rel (0) target = $region41
    $region40: #{tpu_custom_call.1} parent=1 // pred_region
      %97 = dma.done [#allocation9], 128
    $region41: #{tpu_custom_call.1} parent=1 // pred_fallthru
      _
    %98 = vsyncpa [#allocation3], 1
    %99 = vsyncpa [#allocation4], 1
    %100 = vsyncpa [#allocation9], 1
    %101 = vsyncpa [#allocation5], 1

</llo_original>
